<compile_context>
chip_gen: v7x
topology: tpu7x:2x2x1
jax: 0.10.0
libtpu: 0.0.40
codegen_flags: <defaults>
</compile_context>

<pallas_src>
import functools

import jax
import jax.numpy as jnp
from jax.experimental import pallas as pl
from jax.experimental.pallas import tpu as pltpu


def _pool_sum_kernel(x_ref, o_ref, *, num_taps, inv_window):
    """Sum the `num_taps` pooling-window slabs (f32 accumulation) and scale."""
    acc = x_ref[0].astype(jnp.float32)
    for r in range(1, num_taps):              # static unroll, num_taps = stride**2
        acc = acc + x_ref[r].astype(jnp.float32)
    o_ref[...] = (acc * inv_window).astype(o_ref.dtype)


def _pick_layout(P, M, L, s2, itemsize):
    """Choose a lane-dense (rows, lane) factorisation of P and a row-tile size."""
    lane = None
    for cand in (2048, 1024, 512, 256, 128):
        if P % cand == 0:
            lane = cand
            break
    if lane is None:                 # fall back to the natural (N*C, Ho*Wo) plane
        rows, lane = M, L
    else:
        rows = P // lane
    # ~2 MiB of input per grid step so per-step DMA dwarfs the ~0.35us step
    # overhead, while double-buffered in+out tiles stay far below every chip's
    # VMEM budget (v5e 16 MiB scoped default, v7x 64 MiB physical).
    target_in_bytes = 2 * 1024 * 1024
    tpr = min(max(1, target_in_bytes // (s2 * itemsize * lane)), rows)
    if tpr != rows:
        tpr = max(8, (tpr // 8) * 8)          # block-shape rule: multiple of 8 unless full
        if tpr >= rows:
            tpr = rows
    return rows, lane, tpr


@functools.partial(jax.jit, static_argnames=("nOut", "stride"))
def downsample_b(x, *, nOut, stride):
    """Equivalent of DownsampleB(nIn, nOut, stride).forward(x) for NCHW x.

    nOut == nIn gives plain F.avg_pool2d(x, stride) (the ResNet head's pool).
    """
    N, C, H, W = x.shape
    assert nOut % C == 0, "nOut must be a multiple of nIn"
    expand = nOut // C
    Ho, Wo = H // stride, W // stride
    s2 = stride * stride
    M, L, P = N * C, Ho * Wo, N * C * Ho * Wo

    rows, lane, tpr = _pick_layout(P, M, L, s2, x.dtype.itemsize)

    # Crop (no-op when divisible) + window-tap rearrangement; fused by XLA into
    # this jit. The Pallas kernel then reads the data exactly once from HBM.
    xr = (
        x[:, :, : Ho * stride, : Wo * stride]
        .reshape(N, C, Ho, stride, Wo, stride)
        .transpose(3, 5, 0, 1, 2, 4)
        .reshape(s2, rows, lane)
    )

    in_tile = s2 * tpr * lane * x.dtype.itemsize
    out_tile = tpr * lane * x.dtype.itemsize
    vmem_limit = int(min(32 * 2**20, max(16 * 2**20, 6 * (in_tile + out_tile))))

    pooled = pl.pallas_call(
        functools.partial(_pool_sum_kernel, num_taps=s2, inv_window=1.0 / s2),
        out_shape=jax.ShapeDtypeStruct((rows, lane), x.dtype),
        grid=(pl.cdiv(rows, tpr),),
        in_specs=[pl.BlockSpec((s2, tpr, lane), lambda i: (0, i, 0))],
        out_specs=pl.BlockSpec((tpr, lane), lambda i: (i, 0)),
        compiler_params=pltpu.CompilerParams(
            dimension_semantics=("parallel",),
            vmem_limit_bytes=vmem_limit,
        ),
    )(xr)

    pooled = pooled.reshape(N, C, Ho, Wo)
    if expand > 1:
        # Zero channel blocks are produced outside the kernel's DMA path.
        zeros = jnp.zeros((N, (expand - 1) * C, Ho, Wo), pooled.dtype)
        return jnp.concatenate([pooled, zeros], axis=1)
    return pooled


def _reference_downsample_b(x, nOut, stride):
    N, C, H, W = x.shape
    er = nOut // C
    Ho, Wo = H // stride, W // stride
    xp = (
        x[:, :, : Ho * stride, : Wo * stride]
        .reshape(N, C, Ho, stride, Wo, stride)
        .mean(axis=(3, 5))
    )
    if er == 1:
        return xp
    return jnp.concatenate([xp] + [jnp.zeros_like(xp)] * (er - 1), axis=1)


if __name__ == "__main__":
    key = jax.random.PRNGKey(0)

    # DownsampleB(nIn=4, nOut=8, stride=2): the shortcut used by this ResNet
    # family (no learnable parameters exist in this module).
    x = jax.random.normal(key, (2, 4, 16, 16), dtype=jnp.float32)
    out = jax.block_until_ready(downsample_b(x, nOut=8, stride=2))
    ref = _reference_downsample_b(x, 8, 2)
    assert out.shape == (2, 8, 8, 8), out.shape
    assert out.dtype == x.dtype
    assert jnp.allclose(out, ref, atol=1e-5, rtol=1e-5), "mismatch vs reference"

    # The same kernel also implements the ResNet head's F.avg_pool2d(out, 4)
    # (nOut == nIn, stride == 4 => pure average pooling, no zero channels).
    x2 = jax.random.normal(key, (2, 8, 8, 8), dtype=jnp.float32)
    out2 = jax.block_until_ready(downsample_b(x2, nOut=8, stride=4))
    ref2 = _reference_downsample_b(x2, 8, 4)
    assert out2.shape == (2, 8, 2, 2), out2.shape
    assert jnp.allclose(out2, ref2, atol=1e-5, rtol=1e-5), "mismatch vs avg_pool2d ref"

    print("KERNEL_OK")
</pallas_src>

<mosaic_0001>
module attributes {stable_mosaic.version = 11 : i64} {
  func.func @_pool_sum_kernel(%arg0: i32, %arg1: memref<4x1x512xf32, #tpu.memory_space<vmem>>, %arg2: memref<1x512xf32, #tpu.memory_space<vmem>>) attributes {dimension_semantics = [#tpu.dimension_semantics<parallel>], iteration_bounds = array<i64: 1>, scalar_prefetch = 0 : i64, scratch_operands = 0 : i64, tpu.core_type = #tpu.core_type<tc>, window_params = [{transform_indices = @transform_0, window_bounds = array<i64: 4, 1, 512>}, {transform_indices = @transform_1, window_bounds = array<i64: 1, 512>}]} {
    %c0 = arith.constant 0 : index
    %c0_0 = arith.constant 0 : index
    %c0_1 = arith.constant 0 : index
    %0 = vector.load %arg1[%c0, %c0_0, %c0_1] : memref<4x1x512xf32, #tpu.memory_space<vmem>>, vector<1x1x512xf32>
    %1 = vector.shape_cast %0 : vector<1x1x512xf32> to vector<1x512xf32>
    %c1 = arith.constant 1 : index
    %c0_2 = arith.constant 0 : index
    %c0_3 = arith.constant 0 : index
    %2 = vector.load %arg1[%c1, %c0_2, %c0_3] : memref<4x1x512xf32, #tpu.memory_space<vmem>>, vector<1x1x512xf32>
    %3 = vector.shape_cast %2 : vector<1x1x512xf32> to vector<1x512xf32>
    %4 = arith.addf %1, %3 : vector<1x512xf32>
    %c2 = arith.constant 2 : index
    %c0_4 = arith.constant 0 : index
    %c0_5 = arith.constant 0 : index
    %5 = vector.load %arg1[%c2, %c0_4, %c0_5] : memref<4x1x512xf32, #tpu.memory_space<vmem>>, vector<1x1x512xf32>
    %6 = vector.shape_cast %5 : vector<1x1x512xf32> to vector<1x512xf32>
    %7 = arith.addf %4, %6 : vector<1x512xf32>
    %c3 = arith.constant 3 : index
    %c0_6 = arith.constant 0 : index
    %c0_7 = arith.constant 0 : index
    %8 = vector.load %arg1[%c3, %c0_6, %c0_7] : memref<4x1x512xf32, #tpu.memory_space<vmem>>, vector<1x1x512xf32>
    %9 = vector.shape_cast %8 : vector<1x1x512xf32> to vector<1x512xf32>
    %10 = arith.addf %7, %9 : vector<1x512xf32>
    %cst = arith.constant 2.500000e-01 : f32
    %11 = vector.broadcast %cst : f32 to vector<1x512xf32>
    %12 = arith.mulf %10, %11 : vector<1x512xf32>
    %c0_8 = arith.constant 0 : index
    %c0_9 = arith.constant 0 : index
    %13 = vector.load %arg2[%c0_8, %c0_9] : memref<1x512xf32, #tpu.memory_space<vmem>>, vector<1x512xf32>
    tpu.vector_store %arg2[%c0_8, %c0_9], %12 {strides = array<i32>} : memref<1x512xf32, #tpu.memory_space<vmem>>, vector<1x512xf32>,
    return
  }
  func.func @transform_0(%arg0: i32) -> (i32, i32, i32) {
    %c0_i32 = arith.constant 0 : i32
    %c0_i32_0 = arith.constant 0 : i32
    %c0_i32_1 = arith.constant 0 : i32
    return %c0_i32, %arg0, %c0_i32_0 : i32, i32, i32
  }
  func.func @transform_1(%arg0: i32) -> (i32, i32) {
    %c0_i32 = arith.constant 0 : i32
    %c0_i32_0 = arith.constant 0 : i32
    return %arg0, %c0_i32 : i32, i32
  }
}

</mosaic_0001>

<llo_original>
// kernel: downsample_b.1
$region0: #{downsample_b.1}
  #allocation0 [shape = 'u32[]', space=smem, size = 0x4, offset = 0x4, fixed_abs, tag = 'smem constant byte address 0x4 - core index']
  #allocation1 [shape = 'u32[144,128]{1,0:T(1,128)}', space=vmem, size = 0x12000, scoped, tag = 'internal scratch']
  %s0 = inlined_call_operand.vmem [shape: f32[4,1,512], index: 0, kind: input, shape index: {}]
  %s1 = inlined_call_operand.vmem [shape: f32[1,512], index: 1, kind: output, shape index: {}]
  %s2 = sld [smem:[#allocation0]]
  $region14: #{downsample_b.1} parent=0
    _
  %s4 = ssub.s32 1, %s2
  %s5 = scalar_select 0, %s4, %s2
  // Predicated region
  $region2: #{downsample_b.1} parent=0 // pred_check
    _
  $region3: #{downsample_b.1} parent=0 // pred_check_branch
    %7 = sbr.rel (0) target = $region5
  $region4: #{downsample_b.1} parent=0 // pred_region
    _
  $region5: #{downsample_b.1} parent=0 // pred_fallthru
    _
  %v8 = vld [vmem:[%s0] sm:$0xf]
  %s9 = scalar_lea.vmem %s0, 4
  %v10 = vld [vmem:[%s9] sm:$0xf]
  %v11 = vadd.f32 %v8, %v10
  %s12 = scalar_lea.vmem %s0, 8
  %v13 = vld [vmem:[%s12] sm:$0xf]
  %v14 = vadd.f32 %v11, %v13
  %s15 = scalar_lea.vmem %s0, 12
  %v16 = vld [vmem:[%s15] sm:$0xf]
  %v17 = vadd.f32 %v14, %v16
  %v18 = vmul.f32 %v17, 0.25
  %v19 = vlaneseq
  %vm20 = vcmp.ge.s32.totalorder %v19, 0
  %vm21 = vcmp.lt.s32.totalorder %v19, 512
  %vm22 = vmand %vm20, %vm21
  %23 = vst.msk [vmem:[%s1] sm:$0xf] %vm22, %v18
  // Predicated region
  $region6: #{downsample_b.1} parent=0 // pred_check
    _
  $region7: #{downsample_b.1} parent=0 // pred_check_branch
    %25 = sbr.rel (0) target = $region9
  $region8: #{downsample_b.1} parent=0 // pred_region
    _
  $region9: #{downsample_b.1} parent=0 // pred_fallthru
    _
  // Predicated region
  $region10: #{downsample_b.1} parent=0 // pred_check
    _
  $region11: #{downsample_b.1} parent=0 // pred_check_branch
    %27 = sbr.rel (0) target = $region13
  $region12: #{downsample_b.1} parent=0 // pred_region
    _
  $region13: #{downsample_b.1} parent=0 // pred_fallthru
    _

</llo_original>
